<compile_context>
chip_gen: v6e
topology: v6e:2x2x1
jax: 0.10.0
libtpu: 0.0.40
codegen_flags: <defaults>
</compile_context>

<pallas_src>
import jax
import jax.numpy as jnp
from jax.experimental import pallas as pl
from jax.experimental.pallas import tpu as pltpu


def crossmna_tile_kernel(n_ij_ref, l_tmp_ref, w_ref, o_ref):
    tb = l_tmp_ref.shape[0]
    nd = n_ij_ref.shape[2]

    # (2, tile_b, node_dim) -> (2*tile_b, node_dim): layout-preserving stack
    # along sublanes (tile_b % 8 == 0); single MXU matmul for both i and j.
    n2 = n_ij_ref[...].reshape(2 * tb, nd)
    proj = jnp.dot(n2, w_ref[...], preferred_element_type=jnp.float32)

    l_tmp = l_tmp_ref[...]                      # (tile_b, layer_dim)
    l_i = l_tmp + proj[:tb]                     # consumed immediately
    l_j = l_tmp + proj[tb:]

    partial = jnp.sum(l_i * l_j)                # this tile's scalar partial

    # Lane-dense unmasked store; the wrapper reads [0, 0] of each block.
    o_ref[...] = jnp.zeros(o_ref.shape, o_ref.dtype) + partial


def _round_up(x, m):
    return ((x + m - 1) // m) * m


def crossmna_forward(n_emb, l_emb, w, i, j, l, label, *, tile_b=None):
    """CrossMNA forward: wrapper gathers + batch-tiled Pallas partial sums +
    XLA epilogue (log-sigmoid over labels)."""
    batch = i.shape[0]
    node_dim = n_emb.shape[1]
    layer_dim = l_emb.shape[1]

    # ---- gathers (XLA) -----------------------------------------------------
    # Single stacked gather for the two node-embedding lookups.
    # TODO(synk): at production sizes, move the gathers in-kernel (resident
    # VMEM embedding tables + scalar-prefetched i/j/l) to avoid materializing
    # and re-reading n_ij / l_tmp from HBM.
    idx_ij = jnp.stack([i.astype(jnp.int32), j.astype(jnp.int32)], axis=0)
    n_ij = jnp.take(n_emb, idx_ij, axis=0)                   # (2, B, node_dim)
    l_tmp = jnp.take(l_emb, l.astype(jnp.int32), axis=0)     # (B, layer_dim)

    # ---- batch tiling --------------------------------------------------------
    if tile_b is None:
        # Largest multiple of 8 whose double-buffered input streams stay under
        # a conservative VMEM budget (safe on v5e/v6e/v7x), capped for sane
        # DMA chunk sizes.
        bytes_per_row = (2 * node_dim + layer_dim) * 4
        budget = 12 * 1024 * 1024
        cap = max(8, (budget // (2 * bytes_per_row)) // 8 * 8)
        tile_b = int(min(cap, 4096, _round_up(batch, 8)))
    assert tile_b > 0 and tile_b % 8 == 0, "tile_b must be a positive multiple of 8"

    b_pad = _round_up(batch, tile_b)
    if b_pad != batch:
        # Zero rows contribute exactly 0 to sum(l_i * l_j); label is NOT padded
        # (it never enters the kernel).
        n_ij = jnp.pad(n_ij, ((0, 0), (0, b_pad - batch), (0, 0)))
        l_tmp = jnp.pad(l_tmp, ((0, b_pad - batch), (0, 0)))
    num_tiles = b_pad // tile_b

    # ---- VMEM budget / scheduler hints --------------------------------------
    stream_bytes = 2 * (2 * node_dim + layer_dim) * 4 * tile_b   # double-buffered
    fixed_bytes = node_dim * layer_dim * 4 + 2 * 8 * 128 * 4
    vmem_limit = int(min(48 * 1024 * 1024,
                         max(4 * 1024 * 1024, 2 * (stream_bytes + fixed_bytes))))
    cost = pl.CostEstimate(
        flops=4 * b_pad * node_dim * layer_dim,
        transcendentals=0,
        bytes_accessed=(2 * b_pad * node_dim + b_pad * layer_dim
                        + node_dim * layer_dim + num_tiles * 8 * 128) * 4)

    partials = pl.pallas_call(
        crossmna_tile_kernel,
        grid=(num_tiles,),
        in_specs=[
            pl.BlockSpec((2, tile_b, node_dim), lambda t: (0, t, 0)),     # n_ij
            pl.BlockSpec((tile_b, layer_dim), lambda t: (t, 0)),          # l_tmp
            pl.BlockSpec((node_dim, layer_dim), lambda t: (0, 0)),        # w (resident)
        ],
        out_specs=pl.BlockSpec((8, 128), lambda t: (t, 0)),
        out_shape=jax.ShapeDtypeStruct((num_tiles * 8, 128), jnp.float32),
        compiler_params=pltpu.CompilerParams(
            dimension_semantics=("parallel",),
            vmem_limit_bytes=vmem_limit),
        cost_estimate=cost,
    )(n_ij, l_tmp, w)

    # ---- epilogue (XLA): cheap scalar work, keeps label out of VMEM ---------
    s = jnp.sum(partials[0::8, 0])            # sum of per-tile partials
    return -jnp.sum(jax.nn.log_sigmoid(label.astype(jnp.float32) * s))


def crossmna_reference(n_emb, l_emb, w, i, j, l, label):
    """Pure-JAX reference mirroring the PyTorch forward."""
    n_i = jnp.take(n_emb, i.astype(jnp.int32), axis=0)
    n_j = jnp.take(n_emb, j.astype(jnp.int32), axis=0)
    l_tmp = jnp.take(l_emb, l.astype(jnp.int32), axis=0)
    l_i = l_tmp + n_i @ w
    l_j = l_tmp + n_j @ w
    loss = jnp.sum(l_i * l_j)
    return -jnp.sum(jax.nn.log_sigmoid(label.astype(jnp.float32) * loss))


if __name__ == "__main__":
    # Module hyperparameters (small, consistent with the forward pass).
    num_of_nodes = 64
    node_dim = 32
    layer_dim = 16
    num_layer = 4
    batch_size = 20   # with tile_b=8 below this exercises 3 grid steps + padding

    key = jax.random.PRNGKey(0)
    k_nemb, k_lemb, k_w, k_i, k_j, k_l, k_lab = jax.random.split(key, 7)

    # Deterministic parameter init mirroring CrossMNA.__init__.
    initrange = 0.5 / node_dim
    n_emb = jax.random.uniform(
        k_nemb, (num_of_nodes, node_dim), jnp.float32,
        minval=-initrange, maxval=initrange)
    l_emb = jax.random.uniform(
        k_lemb, (num_layer, layer_dim), jnp.float32, minval=-1.0, maxval=1.0)
    w = jax.random.normal(k_w, (node_dim, layer_dim), jnp.float32)

    # Deterministic example inputs.
    i = jax.random.randint(k_i, (batch_size,), 0, num_of_nodes, jnp.int32)
    j = jax.random.randint(k_j, (batch_size,), 0, num_of_nodes, jnp.int32)
    l = jax.random.randint(k_l, (batch_size,), 0, num_layer, jnp.int32)
    label = (jax.random.bernoulli(k_lab, 0.5, (batch_size,))
             .astype(jnp.float32) * 2.0 - 1.0)  # +/-1 labels

    out = crossmna_forward(n_emb, l_emb, w, i, j, l, label, tile_b=8)
    out = jax.block_until_ready(out)

    ref = jax.block_until_ready(
        crossmna_reference(n_emb, l_emb, w, i, j, l, label))
    assert jnp.allclose(out, ref, rtol=1e-5, atol=1e-5), (out, ref)

    print("KERNEL_OK")
</pallas_src>

<mosaic_0001>
module attributes {stable_mosaic.version = 11 : i64} {
  func.func @crossmna_tile_kernel(%arg0: i32, %arg1: memref<2x8x32xf32, #tpu.memory_space<vmem>>, %arg2: memref<8x16xf32, #tpu.memory_space<vmem>>, %arg3: memref<32x16xf32, #tpu.memory_space<vmem>>, %arg4: memref<8x128xf32, #tpu.memory_space<vmem>>) attributes {dimension_semantics = [#tpu.dimension_semantics<parallel>], iteration_bounds = array<i64: 3>, scalar_prefetch = 0 : i64, scratch_operands = 0 : i64, tpu.core_type = #tpu.core_type<tc>, window_params = [{transform_indices = @transform_0, window_bounds = array<i64: 2, 8, 32>}, {transform_indices = @transform_1, window_bounds = array<i64: 8, 16>}, {pipeline_mode = #tpu.pipeline_mode<synchronous>, transform_indices = @transform_2, window_bounds = array<i64: 32, 16>}, {transform_indices = @transform_3, window_bounds = array<i64: 8, 128>}]} {
    %c0 = arith.constant 0 : index
    %c0_0 = arith.constant 0 : index
    %c0_1 = arith.constant 0 : index
    %0 = vector.load %arg1[%c0, %c0_0, %c0_1] : memref<2x8x32xf32, #tpu.memory_space<vmem>>, vector<2x8x32xf32>
    %1 = vector.shape_cast %0 : vector<2x8x32xf32> to vector<16x32xf32>
    %c0_2 = arith.constant 0 : index
    %c0_3 = arith.constant 0 : index
    %2 = vector.load %arg3[%c0_2, %c0_3] : memref<32x16xf32, #tpu.memory_space<vmem>>, vector<32x16xf32>
    %cst = arith.constant dense<0.000000e+00> : vector<16x16xf32>
    %3 = tpu.matmul %1, %2, %cst {dimension_numbers = #tpu.dot_dimension_numbers<[1], [0], [0], [1], [0, 0, 1, 1], [], []>} : vector<16x32xf32>, vector<32x16xf32>, vector<16x16xf32> -> vector<16x16xf32>
    %c0_4 = arith.constant 0 : index
    %c0_5 = arith.constant 0 : index
    %4 = vector.load %arg2[%c0_4, %c0_5] : memref<8x16xf32, #tpu.memory_space<vmem>>, vector<8x16xf32>
    %5 = vector.extract_strided_slice %3 {offsets = [0, 0], sizes = [8, 16], strides = [1, 1]} : vector<16x16xf32> to vector<8x16xf32>
    %6 = arith.addf %4, %5 : vector<8x16xf32>
    %7 = vector.extract_strided_slice %3 {offsets = [8, 0], sizes = [8, 16], strides = [1, 1]} : vector<16x16xf32> to vector<8x16xf32>
    %8 = arith.addf %4, %7 : vector<8x16xf32>
    %9 = arith.mulf %6, %8 : vector<8x16xf32>
    %10 = vector.shape_cast %9 : vector<8x16xf32> to vector<1x8x16xf32>
    %cst_6 = arith.constant dense<0.000000e+00> : vector<1xf32>
    %11 = vector.multi_reduction <add>, %10, %cst_6 [1, 2] : vector<1x8x16xf32> to vector<1xf32>
    %12 = vector.shape_cast %11 : vector<1xf32> to vector<1x1x1xf32>
    %13 = vector.extract %12[0, 0, 0] : f32 from vector<1x1x1xf32>
    %cst_7 = arith.constant 0.000000e+00 : f32
    %14 = vector.broadcast %cst_7 : f32 to vector<8x128xf32>
    %15 = vector.broadcast %13 : f32 to vector<8x128xf32>
    %16 = arith.addf %14, %15 : vector<8x128xf32>
    %c0_8 = arith.constant 0 : index
    %c0_9 = arith.constant 0 : index
    %17 = vector.load %arg4[%c0_8, %c0_9] : memref<8x128xf32, #tpu.memory_space<vmem>>, vector<8x128xf32>
    tpu.vector_store %arg4[%c0_8, %c0_9], %16 {strides = array<i32>} : memref<8x128xf32, #tpu.memory_space<vmem>>, vector<8x128xf32>,
    return
  }
  func.func @transform_0(%arg0: i32) -> (i32, i32, i32) {
    %c0_i32 = arith.constant 0 : i32
    %c0_i32_0 = arith.constant 0 : i32
    %c0_i32_1 = arith.constant 0 : i32
    return %c0_i32, %arg0, %c0_i32_0 : i32, i32, i32
  }
  func.func @transform_1(%arg0: i32) -> (i32, i32) {
    %c0_i32 = arith.constant 0 : i32
    %c0_i32_0 = arith.constant 0 : i32
    return %arg0, %c0_i32 : i32, i32
  }
  func.func @transform_2(%arg0: i32) -> (i32, i32) {
    %c0_i32 = arith.constant 0 : i32
    %c0_i32_0 = arith.constant 0 : i32
    %c0_i32_1 = arith.constant 0 : i32
    return %c0_i32, %c0_i32_0 : i32, i32
  }
  func.func @transform_3(%arg0: i32) -> (i32, i32) {
    %c0_i32 = arith.constant 0 : i32
    %c0_i32_0 = arith.constant 0 : i32
    return %arg0, %c0_i32 : i32, i32
  }
}

</mosaic_0001>

<llo_original>
// kernel: tpu_custom_call.1
$region0: #{tpu_custom_call.1}
  #allocation0 [shape = 'u32[]', space=smem, size = 0x4, offset = 0x4, fixed_abs, tag = 'smem constant byte address 0x4 - core index']
  #allocation1 [shape = 'u32[144,128]{1,0:T(1,128)}', space=vmem, size = 0x12000, scoped, tag = 'internal scratch']
  %s0 = inlined_call_operand.vmem [shape: f32[2,24,32], index: 0, kind: input, shape index: {}]
  %s1 = inlined_call_operand.vmem [shape: f32[24,16], index: 1, kind: input, shape index: {}]
  %s2 = inlined_call_operand.vmem [shape: f32[32,16], index: 2, kind: input, shape index: {}]
  %s3 = inlined_call_operand.hbm [shape: f32[24,128], index: 3, kind: output, shape index: {}]
  %s4 = sld [smem:[#allocation0]]
  $region83: #{tpu_custom_call.1} parent=0
    _
  %s6 = ssub.s32 1, %s4
  %s7 = scalar_select 0, %s6, %s4
  $region1: #{tpu_custom_call.1} parent=0
    #allocation2 [shape = 'u8[16384]{0}', space=vmem, size = 0x4000, scoped, tag = 'input window, operand 0']
    #allocation3 [shape = 'u8[8192]{0}', space=vmem, size = 0x2000, scoped, tag = 'output window, operand 0']
    #allocation4 [shape = 's32[2]{0}', space=sflag, size = 0x8, scoped, tag = 'scoped memory for tpu_custom_call.1']
    %8 = vsyncpa [#allocation4], 0
    %s9 = scalar_lea.sflag [#allocation4], 1
    %10 = vsyncpa %s9, 0
    loop: start=0, step=1, limit=5
    $region2: #{tpu_custom_call.1} parent=1 // loop_pre_header
      _
    $region3: #{tpu_custom_call.1} parent=1 // loop_header
      %s12 = sphi 0, %s16
      %p13 = scmp.ge.s32.totalorder %s12, 5
      %s22 = sphi 0, %s24
      %s25 = sphi 0, %s22
      %s26 = sphi 0, %s25
      %s42 = sphi 0, %s26
      %s48 = sphi 0, %s50
      %s51 = sphi 0, %s48
      %s52 = sphi 0, %s51
      %s68 = sphi 0, %s52
      %s72 = sphi 0, %s72
      %s74 = sphi 0, %s72
      %s75 = sphi 0, %s74
      %s89 = sphi 0, %s75
      %s95 = sphi 0, %s97
      %s98 = sphi 0, %s95
      %s99 = sphi 0, %s98
      %s115 = sphi 0, %s99
    $region4: #{tpu_custom_call.1} parent=1 // loop_header_branch
      %15 = sbr.rel (%p13) target = $region8
    $region5: #{tpu_custom_call.1} parent=1 // loop_body
      %s17 = ssub.s32 %s12, 1
      %s18 = ssub.s32 %s12, 2
      %s19 = sadd.s32 %s12, 1
      %s20 = ssub.s32 %s12, %s19
      %p21 = scmp.eq.s32.totalorder %s20, 0
      %s23 = sadd.s32 %s22, 1
      %s24 = scalar_select %p21, %s22, %s23
      %p27 = pneg %p21
      %p28 = scmp.eq.s32.totalorder %s12, 2
      %p29 = por %p27, %p28
      %p30 = scmp.ne.s32.totalorder %s22, %s25
      %p31 = scmp.eq.s32.totalorder %s12, 0
      %p32 = por %p30, %p31
      %p33 = scmp.ne.s32.totalorder %s22, %s25
      %p34 = scmp.eq.s32.totalorder %s17, 2
      %p35 = por %p33, %p34
      %p36 = scmp.ne.s32.totalorder %s25, %s26
      %p37 = scmp.eq.s32.totalorder %s17, 0
      %p38 = por %p36, %p37
      %p39 = scmp.ne.s32.totalorder %s25, %s26
      %p40 = scmp.eq.s32.totalorder %s18, 2
      %p41 = por %p39, %p40
      %p43 = scmp.ne.s32.totalorder %s26, %s42
      %p44 = scmp.eq.s32.totalorder %s18, 0
      %p45 = por %p43, %p44
      %s46 = ssub.s32 %s12, %s19
      %p47 = scmp.eq.s32.totalorder %s46, 0
      %s49 = sadd.s32 %s48, 1
      %s50 = scalar_select %p47, %s48, %s49
      %p53 = pneg %p47
      %p54 = scmp.eq.s32.totalorder %s12, 2
      %p55 = por %p53, %p54
      %p56 = scmp.ne.s32.totalorder %s48, %s51
      %p57 = scmp.eq.s32.totalorder %s12, 0
      %p58 = por %p56, %p57
      %p59 = scmp.ne.s32.totalorder %s48, %s51
      %p60 = scmp.eq.s32.totalorder %s17, 2
      %p61 = por %p59, %p60
      %p62 = scmp.ne.s32.totalorder %s51, %s52
      %p63 = scmp.eq.s32.totalorder %s17, 0
      %p64 = por %p62, %p63
      %p65 = scmp.ne.s32.totalorder %s51, %s52
      %p66 = scmp.eq.s32.totalorder %s18, 2
      %p67 = por %p65, %p66
      %p69 = scmp.ne.s32.totalorder %s52, %s68
      %p70 = scmp.eq.s32.totalorder %s18, 0
      %p71 = por %p69, %p70
      %s73 = sadd.s32 %s72, 1
      %p76 = scmp.eq.s32.totalorder %s12, 2
      %p77 = scmp.ne.s32.totalorder %s72, %s74
      %p78 = scmp.eq.s32.totalorder %s12, 0
      %p79 = por %p77, %p78
      %p80 = scmp.ne.s32.totalorder %s72, %s74
      %p81 = scmp.eq.s32.totalorder %s17, 2
      %p82 = por %p80, %p81
      %p83 = scmp.ne.s32.totalorder %s74, %s75
      %p84 = scmp.eq.s32.totalorder %s17, 0
      %p85 = por %p83, %p84
      %p86 = scmp.ne.s32.totalorder %s74, %s75
      %p87 = scmp.eq.s32.totalorder %s18, 2
      %p88 = por %p86, %p87
      %p90 = scmp.ne.s32.totalorder %s75, %s89
      %p91 = scmp.eq.s32.totalorder %s18, 0
      %p92 = por %p90, %p91
      %s93 = ssub.s32 %s12, %s19
      %p94 = scmp.eq.s32.totalorder %s93, 0
      %s96 = sadd.s32 %s95, 1
      %s97 = scalar_select %p94, %s95, %s96
      %p100 = pneg %p94
      %p101 = scmp.eq.s32.totalorder %s12, 2
      %p102 = por %p100, %p101
      %p103 = scmp.ne.s32.totalorder %s95, %s98
      %p104 = scmp.eq.s32.totalorder %s12, 0
      %p105 = por %p103, %p104
      %p106 = scmp.ne.s32.totalorder %s95, %s98
      %p107 = scmp.eq.s32.totalorder %s17, 2
      %p108 = por %p106, %p107
      %p109 = scmp.ne.s32.totalorder %s98, %s99
      %p110 = scmp.eq.s32.totalorder %s17, 0
      %p111 = por %p109, %p110
      %p112 = scmp.ne.s32.totalorder %s98, %s99
      %p113 = scmp.eq.s32.totalorder %s18, 2
      %p114 = por %p112, %p113
      %p116 = scmp.ne.s32.totalorder %s99, %s115
      %p117 = scmp.eq.s32.totalorder %s18, 0
      %p118 = por %p116, %p117
      %p119 = scmp.le.s32.totalorder 1, %s12
      %p120 = scmp.lt.s32.totalorder %s12, 4
      %p121 = pnand %p119, %p120
      %p122 = pneg %p121
      // Predicated region
      $region9: #{tpu_custom_call.1} parent=5 // pred_check
        _
      $region10: #{tpu_custom_call.1} parent=5 // pred_check_branch
        %124 = sbr.rel (%p121) target = $region12
      $region11: #{tpu_custom_call.1} parent=5 // pred_region
        %s125 = ssub.s32 %s12, 1
        // Predicated region
        $region13: #{tpu_custom_call.1} parent=11 // pred_check
          %p126 = pneg %p85
        $region14: #{tpu_custom_call.1} parent=11 // pred_check_branch
          %128 = sbr.rel (%p126) target = $region16
        $region15: #{tpu_custom_call.1} parent=11 // pred_region
          _
        $region16: #{tpu_custom_call.1} parent=11 // pred_fallthru
          _
      $region12: #{tpu_custom_call.1} parent=5 // pred_fallthru
        _
      %p129 = scmp.lt.s32.totalorder %s12, 3
      // Predicated region
      $region17: #{tpu_custom_call.1} parent=5 // pred_check
        %p130 = pneg %p129
      $region18: #{tpu_custom_call.1} parent=5 // pred_check_branch
        %132 = sbr.rel (%p130) target = $region20
      $region19: #{tpu_custom_call.1} parent=5 // pred_region
        // Predicated region
        $region21: #{tpu_custom_call.1} parent=19 // pred_check
          %p133 = pneg %p32
        $region22: #{tpu_custom_call.1} parent=19 // pred_check_branch
          %135 = sbr.rel (%p133) target = $region24
        $region23: #{tpu_custom_call.1} parent=19 // pred_region
          %s136 = sand.u32 %s22, 1
          %s137 = sand.u32 %s22, 1
          %s138 = smul.addr %s137, 16
          %s139 = scalar_lea.vmem [#allocation2], %s138
          %s140 = smul.addr %s12, 8
          %s141 = scalar_lea.vmem %s0, %s140
          // Predicated region
          $region25: #{tpu_custom_call.1} parent=23 // pred_check
            _
          $region26: #{tpu_custom_call.1} parent=23 // pred_check_branch
            %143 = sbr.rel (0) target = $region28
          $region27: #{tpu_custom_call.1} parent=23 // pred_region
            // Predicated region
            $region29: #{tpu_custom_call.1} parent=27 // pred_check
              _
            $region30: #{tpu_custom_call.1} parent=27 // pred_check_branch
              %145 = sbr.rel (0) target = $region32
            $region31: #{tpu_custom_call.1} parent=27 // pred_region
              // Predicated region
              $region44: #{tpu_custom_call.1} parent=31 // pred_check
                _
              $region45: #{tpu_custom_call.1} parent=31 // pred_check_branch
                %163 = sbr.rel (0) target = $region47
              $region46: #{tpu_custom_call.1} parent=31 // pred_region
                loop: start=0, step=1, limit=1
                $region48: #{tpu_custom_call.1} parent=46 // loop_pre_header
                  _
                $region49: #{tpu_custom_call.1} parent=46 // loop_header
                  %s165 = sphi 0, %s169
                  %p166 = scmp.ge.s32.totalorder %s165, 1
                  %s170 = sphi %s141, %s141
                  %s171 = sphi %s139, %s139
                $region50: #{tpu_custom_call.1} parent=46 // loop_header_branch
                  %168 = sbr.rel (%p166) target = $region54
                $region51: #{tpu_custom_call.1} parent=46 // loop_body
                  %v172 = vld [vmem:[%s170] sm:$0xff]
                  %173 = vst [vmem:[%s171] sm:$0xff] %v172
                  %v174 = vld [vmem:[%s170 + $0x18] sm:$0xff]
                  %175 = vst [vmem:[%s171 + $0x8] sm:$0xff] %v174
                $region52: #{tpu_custom_call.1} parent=46 // loop_footer
                  %s169 = sadd.s32 1, %s165
                $region53: #{tpu_custom_call.1} parent=46 // loop_footer_branch
                  %164 = sbr.rel target = $region49
                $region54: #{tpu_custom_call.1} parent=46 // loop_exit
                  _
              $region47: #{tpu_custom_call.1} parent=31 // pred_fallthru
                _
              // Predicated region
              $region55: #{tpu_custom_call.1} parent=31 // pred_check
                _
              $region56: #{tpu_custom_call.1} parent=31 // pred_check_branch
                %177 = sbr.rel target = $region58
              $region57: #{tpu_custom_call.1} parent=31 // pred_region
                _
              $region58: #{tpu_custom_call.1} parent=31 // pred_fallthru
                _
            $region32: #{tpu_custom_call.1} parent=27 // pred_fallthru
              _
            // Predicated region
            $region33: #{tpu_custom_call.1} parent=27 // pred_check
              _
            $region34: #{tpu_custom_call.1} parent=27 // pred_check_branch
              %147 = sbr.rel target = $region36
            $region35: #{tpu_custom_call.1} parent=27 // pred_region
              %s149 = ssub.s32 256, 1
              loop: start=0, step=1, limit=1
              $region37: #{tpu_custom_call.1} parent=35 // loop_pre_header
                _
              $region38: #{tpu_custom_call.1} parent=35 // loop_header
                %s151 = sphi 0, %s155
                %p152 = scmp.ge.s32.totalorder %s151, 1
                %s156 = sphi %s141, %s141
                %s157 = sphi %s139, %s139
              $region39: #{tpu_custom_call.1} parent=35 // loop_header_branch
                %154 = sbr.rel (%p152) target = $region43
              $region40: #{tpu_custom_call.1} parent=35 // loop_body
                %v158 = vld [vmem:[%s156] sm:%s149]
                %159 = vst [vmem:[%s157] sm:%s149] %v158
                %v160 = vld [vmem:[%s156 + $0x18] sm:%s149]
                %161 = vst [vmem:[%s157 + $0x8] sm:%s149] %v160
              $region41: #{tpu_custom_call.1} parent=35 // loop_footer
                %s155 = sadd.s32 1, %s151
              $region42: #{tpu_custom_call.1} parent=35 // loop_footer_branch
                %150 = sbr.rel target = $region38
              $region43: #{tpu_custom_call.1} parent=35 // loop_exit
                _
            $region36: #{tpu_custom_call.1} parent=27 // pred_fallthru
              _
          $region28: #{tpu_custom_call.1} parent=23 // pred_fallthru
            _
          %178 = vnop
        $region24: #{tpu_custom_call.1} parent=19 // pred_fallthru
          _
        // Predicated region
        $region59: #{tpu_custom_call.1} parent=19 // pred_check
          %p179 = pneg %p58
        $region60: #{tpu_custom_call.1} parent=19 // pred_check_branch
          %181 = sbr.rel (%p179) target = $region62
        $region61: #{tpu_custom_call.1} parent=19 // pred_region
          %p182 = scmp.lt.s32.totalorder %s12, 2
          %s183 = scalar_select %p182, %s12, 2
          %s184 = smul.addr %s183, 8
          %s185 = scalar_lea.vmem %s1, %s184
        $region62: #{tpu_custom_call.1} parent=19 // pred_fallthru
          _
      $region20: #{tpu_custom_call.1} parent=5 // pred_fallthru
        _
      %p186 = scmp.le.s32.totalorder 1, %s12
      %p187 = scmp.lt.s32.totalorder %s12, 4
      %p188 = pnand %p186, %p187
      %p189 = pneg %p188
      // Predicated region
      $region63: #{tpu_custom_call.1} parent=5 // pred_check
        _
      $region64: #{tpu_custom_call.1} parent=5 // pred_check_branch
        %191 = sbr.rel (%p188) target = $region66
      $region65: #{tpu_custom_call.1} parent=5 // pred_region
        %s192 = ssub.s32 %s12, 1
        %s193 = sand.u32 %s25, 1
        %s194 = sand.u32 %s25, 1
        %s195 = smul.addr %s194, 16
        %s196 = scalar_lea.vmem [#allocation2], %s195
        // Predicated region
        $region67: #{tpu_custom_call.1} parent=65 // pred_check
          %p197 = pneg %p38
        $region68: #{tpu_custom_call.1} parent=65 // pred_check_branch
          %199 = sbr.rel (%p197) target = $region70
        $region69: #{tpu_custom_call.1} parent=65 // pred_region
          _
        $region70: #{tpu_custom_call.1} parent=65 // pred_fallthru
          _
        %s200 = sand.u32 %s25, 1
        %s201 = sand.u32 %s25, 1
        %s202 = smul.addr %s201, 16
        %s203 = scalar_lea.vmem [#allocation2], %s202
        %p204 = pneg %p38
        %p205 = pneg %p35
        %p206 = scmp.lt.s32.totalorder %s17, 2
        %s207 = scalar_select %p206, %s17, 2
        %s208 = smul.addr %s207, 8
        %s209 = scalar_lea.vmem %s1, %s208
        %p210 = pneg %p64
        %p211 = pneg %p61
        %p212 = pneg %p85
        %p213 = pneg %p82
        %p214 = pneg %p111
        %p215 = pneg %p108
        %s216 = sand.u32 %s98, 1
        %s217 = scalar_lea.sflag [#allocation4], %s216
        %s218 = sand.u32 %s98, 1
        %s219 = smul.addr %s218, 8
        %s220 = scalar_lea.vmem [#allocation3], %s219
        %p221 = scmp.lt.s32.totalorder %s17, 2
        %s222 = scalar_select %p221, %s17, 2
        %s223 = smul.addr %s222, 8
        %s224 = scalar_lea.vmem %s1, %s223
        %v225 = vld [vmem:[%s196] sm:$0xff]
        %v226 = vld [vmem:[%s196 + $0x8] sm:$0xff]
        %v227 = vld [vmem:[%s2] sm:$0xff]
        %v228 = vld [vmem:[%s2 + $0x8] sm:$0xff]
        %v229 = vld [vmem:[%s2 + $0x10] sm:$0xff]
        %v230 = vld [vmem:[%s2 + $0x18] sm:$0xff]
        %vm231 = vcmask 261120
        %v233 = vsel %vm231, %v225, 0
        %v236 = vsel %vm231, %v226, 0
        %238 = vmatprep.subr.mxu0 0.0
        %239 = vmatpush1.msra.mxu0 0.0
        %240 = vmatprep.subr.mxu0 0.0
        %241 = vmatpush1.msra.mxu0 0.0
        %242 = vmatprep.subr.mxu0 0.0
        %243 = vmatpush1.msra.mxu0 0.0
        %244 = vmatprep.subr.mxu0 0.0
        %245 = vmatpush1.msra.mxu0 0.0
        %246 = vmatprep.subr.mxu0 0.0
        %247 = vmatpush1.msra.mxu0 0.0
        %248 = vmatprep.subr.mxu0 0.0
        %249 = vmatpush1.msra.mxu0 0.0
        %250 = vmatprep.subr.mxu0 0.0
        %251 = vmatpush1.msra.mxu0 0.0
        %252 = vmatprep.subr.mxu0 0.0
        %253 = vmatpush1.msra.mxu0 0.0
        %254 = vmatprep.subr.mxu0 0.0
        %255 = vmatpush1.msra.mxu0 0.0
        %256 = vmatprep.subr.mxu0 0.0
        %257 = vmatpush1.msra.mxu0 0.0
        %258 = vmatprep.subr.mxu0 0.0
        %259 = vmatpush1.msra.mxu0 0.0
        %260 = vmatprep.subr.mxu0 0.0
        %261 = vmatpush1.msra.mxu0 0.0
        %262 = vmatprep.subr.mxu0 0.0
        %263 = vmatpush1.msra.mxu0 %v230
        %264 = vmatprep.subr.mxu0 0.0
        %265 = vmatpush1.msra.mxu0 %v229
        %266 = vmatprep.subr.mxu0 0.0
        %267 = vmatpush1.msra.mxu0 %v228
        %268 = vmatprep.subr.mxu0 0.0
        %269 = vmatpush1.msra.mxu0 %v227
        %270 = vmatprep.subr.mxu0 0.0
        %271 = vmatpush2.msra.mxu0 0.0
        %272 = vmatprep.subr.mxu0 0.0
        %273 = vmatpush2.msra.mxu0 0.0
        %274 = vmatprep.subr.mxu0 0.0
        %275 = vmatpush2.msra.mxu0 0.0
        %276 = vmatprep.subr.mxu0 0.0
        %277 = vmatpush2.msra.mxu0 0.0
        %278 = vmatprep.subr.mxu0 0.0
        %279 = vmatpush2.msra.mxu0 0.0
        %280 = vmatprep.subr.mxu0 0.0
        %281 = vmatpush2.msra.mxu0 0.0
        %282 = vmatprep.subr.mxu0 0.0
        %283 = vmatpush2.msra.mxu0 0.0
        %284 = vmatprep.subr.mxu0 0.0
        %285 = vmatpush2.msra.mxu0 0.0
        %286 = vmatprep.subr.mxu0 0.0
        %287 = vmatpush2.msra.mxu0 0.0
        %288 = vmatprep.subr.mxu0 0.0
        %289 = vmatpush2.msra.mxu0 0.0
        %290 = vmatprep.subr.mxu0 0.0
        %291 = vmatpush2.msra.mxu0 0.0
        %292 = vmatprep.subr.mxu0 0.0
        %293 = vmatpush2.msra.mxu0 0.0
        %294 = vmatprep.subr.mxu0 0.0
        %295 = vmatpush2.msra.mxu0 0.0
        %296 = vmatprep.subr.mxu0 0.0
        %297 = vmatpush2.msra.mxu0 0.0
        %298 = vmatprep.subr.mxu0 0.0
        %299 = vmatpush2.msra.mxu0 0.0
        %300 = vmatprep.subr.mxu0 0.0
        %301 = vmatpush2.msra.mxu0 0.0
        %302 = vmatprep.mubr.f32.mxu0 0.0
        %303 = vmatmul.mubr.f32.gmra.mxu0 %v233
        %v304 = vpop.f32.mrf.mxu0
        %v305 = vadd.f32 0.0, %v304
        %v306 = vpop.f32.mrf.mxu0
        %307 = vmatprep.mubr.f32.mxu0 0.0
        %308 = vmatmul.mubr.f32.gmra.mxu0 %v236
        %v309 = vpop.f32.mrf.mxu0
        %v310 = vadd.f32 0.0, %v309
        %v311 = vpop.f32.mrf.mxu0
        %312 = vdwg.mxu0
        %v313 = vld [vmem:[%s224] sm:$0xff]
        %v314 = vadd.f32 %v313, %v305
        %v315 = vadd.f32 %v313, %v310
        %v316 = vmul.f32 %v314, %v315
        %vm317 = vcmask 130048
        %v318 = vsel %vm317, %v316, 0.0
        %319 = vadd.xlane.f32.xlu0 %v318
        %v320 = vpop.xlane.xlu0 %319
        %v321 = vrot.slane %v320, 4
        %v322 = vadd.f32 %v320, %v321
        %v323 = vrot.slane %v322, 2
        %v324 = vadd.f32 %v322, %v323
        %v325 = vrot.slane %v324, 1
        %v326 = vadd.f32 %v324, %v325
        %s327 = vtos %v326
        %v328 = vstv %s327
        %v329 = vadd.f32 %v328, 0.0
        %330 = vst [vmem:[%s220] sm:$0xff] %v329
        %s331 = sand.u32 %s98, 1
        %s332 = scalar_lea.sflag [#allocation4], %s331
        %s333 = sand.u32 %s98, 1
        %s334 = smul.addr %s333, 8
        %s335 = scalar_lea.vmem [#allocation3], %s334
        // Predicated region
        $region71: #{tpu_custom_call.1} parent=65 // pred_check
          %p336 = pneg %p108
        $region72: #{tpu_custom_call.1} parent=65 // pred_check_branch
          %338 = sbr.rel (%p336) target = $region74
        $region73: #{tpu_custom_call.1} parent=65 // pred_region
          %s340 = ssub.s32 128, 128
          %341 = vsyncadd %s332, %s340
          %s342 = smul.addr %s17, 128
          %s343 = scalar_lea.hbm %s3, %s342
          %s345 = sshll.u32 %s335, 4
          %s346 = int_to_ptr.vmem [resolvable:$true] %s345
          %348 = dma.vmem_to_hbm [thread:$0]  %s346, 128, %s343, %s332
        $region74: #{tpu_custom_call.1} parent=65 // pred_fallthru
          _
      $region66: #{tpu_custom_call.1} parent=5 // pred_fallthru
        _
      %p349 = scmp.le.s32.totalorder 2, %s12
      // Predicated region
      $region75: #{tpu_custom_call.1} parent=5 // pred_check
        %p350 = pneg %p349
      $region76: #{tpu_custom_call.1} parent=5 // pred_check_branch
        %352 = sbr.rel (%p350) target = $region78
      $region77: #{tpu_custom_call.1} parent=5 // pred_region
        %s353 = ssub.s32 %s12, 2
        // Predicated region
        $region79: #{tpu_custom_call.1} parent=77 // pred_check
          %p354 = pneg %p114
        $region80: #{tpu_custom_call.1} parent=77 // pred_check_branch
          %356 = sbr.rel (%p354) target = $region82
        $region81: #{tpu_custom_call.1} parent=77 // pred_region
          %s357 = sand.u32 %s99, 1
          %s358 = scalar_lea.sflag [#allocation4], %s357
          %s359 = sand.u32 %s99, 1
          %s360 = smul.addr %s359, 8
          %s361 = scalar_lea.vmem [#allocation3], %s360
          %362 = dma.done %s358, 128
        $region82: #{tpu_custom_call.1} parent=77 // pred_fallthru
          _
      $region78: #{tpu_custom_call.1} parent=5 // pred_fallthru
        _
    $region6: #{tpu_custom_call.1} parent=1 // loop_footer
      %s16 = sadd.s32 1, %s12
    $region7: #{tpu_custom_call.1} parent=1 // loop_footer_branch
      %11 = sbr.rel target = $region3
    $region8: #{tpu_custom_call.1} parent=1 // loop_exit
      _
    %363 = vsyncpa [#allocation4], 1
    %s364 = scalar_lea.sflag [#allocation4], 1
    %365 = vsyncpa %s364, 1

</llo_original>
